<compile_context>
chip_gen: v6e
topology: v6e:2x2x1
jax: 0.10.0
libtpu: 0.0.40
codegen_flags: <defaults>
</compile_context>

<pallas_src>
import functools

import jax
import jax.numpy as jnp
from jax import lax
from jax.experimental import pallas as pl
from jax.experimental.pallas import tpu as pltpu


def _bert_output_kernel(x_ref, w_ref, b_ref, res_ref, g_ref, beta_ref, o_ref,
                        *, eps: float):
    # x_ref:    (TM, I)  bf16 hidden_states rows
    # w_ref:    (I,  H)  bf16 dense weight (transposed)
    # b_ref:    (1,  H)  f32  dense bias
    # res_ref:  (TM, H)  bf16 residual (input_tensor rows)
    # g_ref:    (1,  H)  f32  LayerNorm gamma
    # beta_ref: (1,  H)  f32  LayerNorm beta
    # o_ref:    (TM, H)
    # Dense: bf16 x bf16 matmul on the MXU with f32 accumulation.
    h = jnp.dot(x_ref[...], w_ref[...], preferred_element_type=jnp.float32)
    h = h + b_ref[...]

    # TODO(synk): dropout is identity in inference mode (no RNG masking applied).

    # Residual add (f32).
    h = h + res_ref[...].astype(jnp.float32)

    # LayerNorm over the hidden dim. One-pass moments (E[h^2] - mean^2): the
    # two cross-lane reductions are independent -> shorter XLU dependency chain.
    mean = jnp.mean(h, axis=-1, keepdims=True)
    mean_sq = jnp.mean(h * h, axis=-1, keepdims=True)
    var = jnp.maximum(mean_sq - mean * mean, 0.0)
    normed = (h - mean) * lax.rsqrt(var + eps)
    out = normed * g_ref[...] + beta_ref[...]

    o_ref[...] = out.astype(o_ref.dtype)


_ROW_ALIGN = 16  # bf16 sublane packing: keep row tiles multiples of 16.


def _round_up(x: int, m: int) -> int:
    return pl.cdiv(x, m) * m


def _choose_block_m(M: int, I: int, H: int, *,
                    max_block_m: int = 512,
                    vmem_budget_bytes: int = 40 << 20) -> int:
    """Largest row tile whose VMEM working set fits the budget.

    Budget model:
      fixed   : W^T bf16 single-buffered (I*H*2) + bias/gamma/beta f32
      per row : x bf16 x2 bufs + res bf16 x2 + out f32 x2 + ~2 f32 (TM,H) temps
    For BERT-base (I=3072, H=768) this lands at block_m=512.
    """
    fixed = I * H * 2 + 3 * H * 4
    per_row = 2 * I * 2 + 2 * H * 2 + 2 * H * 4 + 2 * H * 4
    avail = max(vmem_budget_bytes - fixed, per_row * _ROW_ALIGN)
    bm = min(max_block_m, avail // per_row)
    bm = max(_ROW_ALIGN, (bm // _ROW_ALIGN) * _ROW_ALIGN)
    return int(min(bm, _round_up(M, _ROW_ALIGN)))


def bert_output_forward(hidden_states, input_tensor, w_t, bias, gamma, beta,
                        *, eps=1e-12, block_m=None,
                        compute_dtype=jnp.bfloat16):
    """hidden_states: [B, S, I], input_tensor: [B, S, H] -> [B, S, H]."""
    B, S, I = hidden_states.shape
    H = input_tensor.shape[-1]
    out_dtype = input_tensor.dtype
    M = B * S

    if block_m is None:
        block_m = _choose_block_m(M, I, H)
    num_blocks = pl.cdiv(M, block_m)
    M_pad = num_blocks * block_m

    # Flatten rows, cast streamed operands to bf16, zero-pad the row tail.
    x2d = hidden_states.reshape(M, I).astype(compute_dtype)
    res2d = input_tensor.reshape(M, H).astype(compute_dtype)
    if M_pad != M:
        pad = M_pad - M
        x2d = jnp.pad(x2d, ((0, pad), (0, 0)))
        res2d = jnp.pad(res2d, ((0, pad), (0, 0)))
    w2d = w_t.astype(compute_dtype)
    b2d = bias.reshape(1, H).astype(jnp.float32)
    g2d = gamma.reshape(1, H).astype(jnp.float32)
    beta2d = beta.reshape(1, H).astype(jnp.float32)

    def _invariant(shape):
        # Grid-invariant block (constant index_map): single buffer saves VMEM.
        try:
            return pl.BlockSpec(shape, lambda i: (0, 0),
                                pipeline_mode=pl.Buffered(1))
        except TypeError:  # fallback if pipeline_mode kwarg is unavailable
            return pl.BlockSpec(shape, lambda i: (0, 0))

    # NOTE: for real BERT (H=768) the output tile is lane-dense (multiple of
    # 128); the toy demo H=32 falls back to masked stores, which is fine here.
    # TODO(synk): for very large intermediate_size, tile I with a K grid axis
    # and an f32 VMEM accumulator (pl.when init/finalize) to bound VMEM on v7x.
    out2d = pl.pallas_call(
        functools.partial(_bert_output_kernel, eps=eps),
        out_shape=jax.ShapeDtypeStruct((M_pad, H), out_dtype),
        grid_spec=pltpu.PrefetchScalarGridSpec(
            num_scalar_prefetch=0,
            grid=(num_blocks,),
            in_specs=[
                pl.BlockSpec((block_m, I), lambda i: (i, 0)),   # x rows
                _invariant((I, H)),                             # W^T (whole)
                _invariant((1, H)),                             # bias
                pl.BlockSpec((block_m, H), lambda i: (i, 0)),   # residual rows
                _invariant((1, H)),                             # gamma
                _invariant((1, H)),                             # beta
            ],
            out_specs=pl.BlockSpec((block_m, H), lambda i: (i, 0)),
        ),
        compiler_params=pltpu.CompilerParams(
            dimension_semantics=("parallel",),  # shards rows across TCs (v7x)
            vmem_limit_bytes=48 << 20,
        ),
    )(x2d, w2d, b2d, res2d, g2d, beta2d)

    if M_pad != M:
        out2d = out2d[:M]
    return out2d.reshape(B, S, H)


def _reference(hidden_states, input_tensor, w_t, bias, gamma, beta, eps):
    h = jnp.einsum("bsi,ih->bsh", hidden_states, w_t) + bias
    h = h + input_tensor
    mu = jnp.mean(h, axis=-1, keepdims=True)
    var = jnp.mean((h - mu) ** 2, axis=-1, keepdims=True)
    return (h - mu) / jnp.sqrt(var + eps) * gamma + beta


if __name__ == "__main__":
    # Small config consistent with BertOutput: intermediate_size=64, hidden_size=32.
    B, S = 2, 8
    INTERMEDIATE, HIDDEN = 64, 32
    EPS = 1e-12

    key = jax.random.PRNGKey(0)
    k_x, k_res, k_w, k_b, k_g, k_beta = jax.random.split(key, 6)

    hidden_states = jax.random.normal(k_x, (B, S, INTERMEDIATE), dtype=jnp.float32)
    input_tensor = jax.random.normal(k_res, (B, S, HIDDEN), dtype=jnp.float32)

    # "Linear(intermediate, hidden)" params stored as W^T [I, H].
    w_t = jax.random.normal(k_w, (INTERMEDIATE, HIDDEN), dtype=jnp.float32) * 0.02
    bias = jax.random.normal(k_b, (HIDDEN,), dtype=jnp.float32) * 0.02
    gamma = jnp.ones((HIDDEN,), jnp.float32) + 0.1 * jax.random.normal(k_g, (HIDDEN,))
    beta = 0.1 * jax.random.normal(k_beta, (HIDDEN,))

    out = bert_output_forward(hidden_states, input_tensor, w_t, bias, gamma, beta,
                              eps=EPS)
    out = jax.block_until_ready(out)

    ref = _reference(hidden_states, input_tensor, w_t, bias, gamma, beta, EPS)
    assert out.shape == (B, S, HIDDEN)
    # bf16 streamed operands with f32 accumulation -> loose tolerance vs f32 ref.
    assert jnp.allclose(out, ref, atol=3e-2, rtol=3e-2), "mismatch vs reference"

    # Exercise the cdiv + row-padding path (M = 14 not tile-aligned).
    hs2 = hidden_states[:, :7]
    it2 = input_tensor[:, :7]
    out2 = jax.block_until_ready(
        bert_output_forward(hs2, it2, w_t, bias, gamma, beta, eps=EPS))
    ref2 = _reference(hs2, it2, w_t, bias, gamma, beta, EPS)
    assert out2.shape == (2, 7, HIDDEN)
    assert jnp.allclose(out2, ref2, atol=3e-2, rtol=3e-2), "mismatch (padded path)"

    print("KERNEL_OK")
</pallas_src>

<mosaic_0001>
module attributes {stable_mosaic.version = 11 : i64} {
  func.func @_bert_output_kernel(%arg0: i32, %arg1: memref<16x64xbf16, #tpu.memory_space<vmem>>, %arg2: memref<64x32xbf16, #tpu.memory_space<vmem>>, %arg3: memref<1x32xf32, #tpu.memory_space<vmem>>, %arg4: memref<16x32xbf16, #tpu.memory_space<vmem>>, %arg5: memref<1x32xf32, #tpu.memory_space<vmem>>, %arg6: memref<1x32xf32, #tpu.memory_space<vmem>>, %arg7: memref<16x32xf32, #tpu.memory_space<vmem>>) attributes {dimension_semantics = [#tpu.dimension_semantics<parallel>], iteration_bounds = array<i64: 1>, scalar_prefetch = 0 : i64, scratch_operands = 0 : i64, tpu.core_type = #tpu.core_type<tc>, window_params = [{transform_indices = @transform_0, window_bounds = array<i64: 16, 64>}, {pipeline_mode = #tpu.pipeline_mode<synchronous>, transform_indices = @transform_1, window_bounds = array<i64: 64, 32>}, {pipeline_mode = #tpu.pipeline_mode<synchronous>, transform_indices = @transform_2, window_bounds = array<i64: 1, 32>}, {transform_indices = @transform_3, window_bounds = array<i64: 16, 32>}, {pipeline_mode = #tpu.pipeline_mode<synchronous>, transform_indices = @transform_4, window_bounds = array<i64: 1, 32>}, {pipeline_mode = #tpu.pipeline_mode<synchronous>, transform_indices = @transform_5, window_bounds = array<i64: 1, 32>}, {transform_indices = @transform_6, window_bounds = array<i64: 16, 32>}]} {
    %c0 = arith.constant 0 : index
    %c0_0 = arith.constant 0 : index
    %0 = vector.load %arg1[%c0, %c0_0] : memref<16x64xbf16, #tpu.memory_space<vmem>>, vector<16x64xbf16>
    %c0_1 = arith.constant 0 : index
    %c0_2 = arith.constant 0 : index
    %1 = vector.load %arg2[%c0_1, %c0_2] : memref<64x32xbf16, #tpu.memory_space<vmem>>, vector<64x32xbf16>
    %cst = arith.constant dense<0.000000e+00> : vector<16x32xf32>
    %2 = tpu.matmul %0, %1, %cst {dimension_numbers = #tpu.dot_dimension_numbers<[1], [0], [0], [1], [0, 0, 1, 1], [], []>} : vector<16x64xbf16>, vector<64x32xbf16>, vector<16x32xf32> -> vector<16x32xf32>
    %c0_3 = arith.constant 0 : index
    %c0_4 = arith.constant 0 : index
    %3 = vector.load %arg3[%c0_3, %c0_4] : memref<1x32xf32, #tpu.memory_space<vmem>>, vector<1x32xf32>
    %4 = vector.broadcast %3 : vector<1x32xf32> to vector<16x32xf32>
    %5 = arith.addf %2, %4 : vector<16x32xf32>
    %c0_5 = arith.constant 0 : index
    %c0_6 = arith.constant 0 : index
    %6 = vector.load %arg4[%c0_5, %c0_6] : memref<16x32xbf16, #tpu.memory_space<vmem>>, vector<16x32xbf16>
    %7 = arith.extf %6 : vector<16x32xbf16> to vector<16x32xf32>
    %8 = arith.addf %5, %7 : vector<16x32xf32>
    %cst_7 = arith.constant dense<0.000000e+00> : vector<16xf32>
    %9 = vector.multi_reduction <add>, %8, %cst_7 [1] : vector<16x32xf32> to vector<16xf32>
    %10 = vector.shape_cast %9 : vector<16xf32> to vector<16x1xf32>
    %cst_8 = arith.constant 3.200000e+01 : f32
    %11 = vector.broadcast %cst_8 : f32 to vector<16x1xf32>
    %12 = arith.divf %10, %11 : vector<16x1xf32>
    %13 = arith.mulf %8, %8 : vector<16x32xf32>
    %cst_9 = arith.constant dense<0.000000e+00> : vector<16xf32>
    %14 = vector.multi_reduction <add>, %13, %cst_9 [1] : vector<16x32xf32> to vector<16xf32>
    %15 = vector.shape_cast %14 : vector<16xf32> to vector<16x1xf32>
    %cst_10 = arith.constant 3.200000e+01 : f32
    %16 = vector.broadcast %cst_10 : f32 to vector<16x1xf32>
    %17 = arith.divf %15, %16 : vector<16x1xf32>
    %18 = arith.mulf %12, %12 : vector<16x1xf32>
    %19 = arith.subf %17, %18 : vector<16x1xf32>
    %cst_11 = arith.constant 0.000000e+00 : f32
    %20 = vector.broadcast %cst_11 : f32 to vector<16x1xf32>
    %21 = arith.maximumf %19, %20 : vector<16x1xf32>
    %22 = vector.broadcast %12 : vector<16x1xf32> to vector<16x32xf32>
    %23 = arith.subf %8, %22 : vector<16x32xf32>
    %cst_12 = arith.constant 9.99999996E-13 : f32
    %24 = vector.broadcast %cst_12 : f32 to vector<16x1xf32>
    %25 = arith.addf %21, %24 : vector<16x1xf32>
    %26 = math.rsqrt %25 : vector<16x1xf32>
    %27 = vector.broadcast %26 : vector<16x1xf32> to vector<16x32xf32>
    %28 = arith.mulf %23, %27 : vector<16x32xf32>
    %c0_13 = arith.constant 0 : index
    %c0_14 = arith.constant 0 : index
    %29 = vector.load %arg5[%c0_13, %c0_14] : memref<1x32xf32, #tpu.memory_space<vmem>>, vector<1x32xf32>
    %30 = vector.broadcast %29 : vector<1x32xf32> to vector<16x32xf32>
    %31 = arith.mulf %28, %30 : vector<16x32xf32>
    %c0_15 = arith.constant 0 : index
    %c0_16 = arith.constant 0 : index
    %32 = vector.load %arg6[%c0_15, %c0_16] : memref<1x32xf32, #tpu.memory_space<vmem>>, vector<1x32xf32>
    %33 = vector.broadcast %32 : vector<1x32xf32> to vector<16x32xf32>
    %34 = arith.addf %31, %33 : vector<16x32xf32>
    %c0_17 = arith.constant 0 : index
    %c0_18 = arith.constant 0 : index
    %35 = vector.load %arg7[%c0_17, %c0_18] : memref<16x32xf32, #tpu.memory_space<vmem>>, vector<16x32xf32>
    tpu.vector_store %arg7[%c0_17, %c0_18], %34 {strides = array<i32>} : memref<16x32xf32, #tpu.memory_space<vmem>>, vector<16x32xf32>,
    return
  }
  func.func @transform_0(%arg0: i32) -> (i32, i32) {
    %c0_i32 = arith.constant 0 : i32
    %c0_i32_0 = arith.constant 0 : i32
    return %arg0, %c0_i32 : i32, i32
  }
  func.func @transform_1(%arg0: i32) -> (i32, i32) {
    %c0_i32 = arith.constant 0 : i32
    %c0_i32_0 = arith.constant 0 : i32
    %c0_i32_1 = arith.constant 0 : i32
    return %c0_i32, %c0_i32_0 : i32, i32
  }
  func.func @transform_2(%arg0: i32) -> (i32, i32) {
    %c0_i32 = arith.constant 0 : i32
    %c0_i32_0 = arith.constant 0 : i32
    %c0_i32_1 = arith.constant 0 : i32
    return %c0_i32, %c0_i32_0 : i32, i32
  }
  func.func @transform_3(%arg0: i32) -> (i32, i32) {
    %c0_i32 = arith.constant 0 : i32
    %c0_i32_0 = arith.constant 0 : i32
    return %arg0, %c0_i32 : i32, i32
  }
  func.func @transform_4(%arg0: i32) -> (i32, i32) {
    %c0_i32 = arith.constant 0 : i32
    %c0_i32_0 = arith.constant 0 : i32
    %c0_i32_1 = arith.constant 0 : i32
    return %c0_i32, %c0_i32_0 : i32, i32
  }
  func.func @transform_5(%arg0: i32) -> (i32, i32) {
    %c0_i32 = arith.constant 0 : i32
    %c0_i32_0 = arith.constant 0 : i32
    %c0_i32_1 = arith.constant 0 : i32
    return %c0_i32, %c0_i32_0 : i32, i32
  }
  func.func @transform_6(%arg0: i32) -> (i32, i32) {
    %c0_i32 = arith.constant 0 : i32
    %c0_i32_0 = arith.constant 0 : i32
    return %arg0, %c0_i32 : i32, i32
  }
}

</mosaic_0001>

<llo_original>
// kernel: tpu_custom_call.1
$region0: #{tpu_custom_call.1}
  #allocation0 [shape = 'u32[]', space=smem, size = 0x4, offset = 0x4, fixed_abs, tag = 'smem constant byte address 0x4 - core index']
  #allocation1 [shape = 'u32[144,128]{1,0:T(1,128)}', space=vmem, size = 0x12000, scoped, tag = 'internal scratch']
  %s0 = inlined_call_operand.vmem [shape: bf16[16,64], index: 0, kind: input, shape index: {}]
  %s1 = inlined_call_operand.vmem [shape: bf16[64,32], index: 1, kind: input, shape index: {}]
  %s2 = inlined_call_operand.vmem [shape: f32[1,32], index: 2, kind: input, shape index: {}]
  %s3 = inlined_call_operand.vmem [shape: bf16[16,32], index: 3, kind: input, shape index: {}]
  %s4 = inlined_call_operand.vmem [shape: f32[1,32], index: 4, kind: input, shape index: {}]
  %s5 = inlined_call_operand.vmem [shape: f32[1,32], index: 5, kind: input, shape index: {}]
  %s6 = inlined_call_operand.hbm [shape: f32[16,32], index: 6, kind: output, shape index: {}]
  %s7 = sld [smem:[#allocation0]]
  $region34: #{tpu_custom_call.1} parent=0
    _
  %s9 = ssub.s32 1, %s7
  %s10 = scalar_select 0, %s9, %s7
  $region1: #{tpu_custom_call.1} parent=0
    #allocation2 [shape = 'u8[8192]{0}', space=vmem, size = 0x2000, scoped, tag = 'output window, operand 0, single buffered']
    #allocation3 [shape = 's32[1]{0}', space=sflag, size = 0x4, scoped, tag = 'scoped memory for tpu_custom_call.1']
    %11 = vsyncpa [#allocation3], 0
    // Predicated region
    $region2: #{tpu_custom_call.1} parent=1 // pred_check
      _
    $region3: #{tpu_custom_call.1} parent=1 // pred_check_branch
      %13 = sbr.rel (0) target = $region5
    $region4: #{tpu_custom_call.1} parent=1 // pred_region
      _
    $region5: #{tpu_custom_call.1} parent=1 // pred_fallthru
      _
    // Predicated region
    $region6: #{tpu_custom_call.1} parent=1 // pred_check
      _
    $region7: #{tpu_custom_call.1} parent=1 // pred_check_branch
      %15 = sbr.rel (0) target = $region9
    $region8: #{tpu_custom_call.1} parent=1 // pred_region
      _
    $region9: #{tpu_custom_call.1} parent=1 // pred_fallthru
      _
    // Predicated region
    $region10: #{tpu_custom_call.1} parent=1 // pred_check
      _
    $region11: #{tpu_custom_call.1} parent=1 // pred_check_branch
      %17 = sbr.rel (0) target = $region13
    $region12: #{tpu_custom_call.1} parent=1 // pred_region
      _
    $region13: #{tpu_custom_call.1} parent=1 // pred_fallthru
      _
    // Predicated region
    $region14: #{tpu_custom_call.1} parent=1 // pred_check
      _
    $region15: #{tpu_custom_call.1} parent=1 // pred_check_branch
      %19 = sbr.rel (0) target = $region17
    $region16: #{tpu_custom_call.1} parent=1 // pred_region
      _
    $region17: #{tpu_custom_call.1} parent=1 // pred_fallthru
      _
    // Predicated region
    $region18: #{tpu_custom_call.1} parent=1 // pred_check
      _
    $region19: #{tpu_custom_call.1} parent=1 // pred_check_branch
      %21 = sbr.rel (0) target = $region21
    $region20: #{tpu_custom_call.1} parent=1 // pred_region
      _
    $region21: #{tpu_custom_call.1} parent=1 // pred_fallthru
      _
    // Predicated region
    $region22: #{tpu_custom_call.1} parent=1 // pred_check
      _
    $region23: #{tpu_custom_call.1} parent=1 // pred_check_branch
      %23 = sbr.rel (0) target = $region25
    $region24: #{tpu_custom_call.1} parent=1 // pred_region
      _
    $region25: #{tpu_custom_call.1} parent=1 // pred_fallthru
      _
    %v25 = vld [vmem:[%s0] sm:$0xf]
    %v26 = vld [vmem:[%s0 + $0x4] sm:$0xf]
    %v27 = vld [vmem:[%s1] sm:$0xf]
    %v28 = vld [vmem:[%s1 + $0x4] sm:$0xf]
    %v29 = vld [vmem:[%s1 + $0x8] sm:$0xf]
    %v30 = vld [vmem:[%s1 + $0xc] sm:$0xf]
    %v31 = vld [vmem:[%s1 + $0x10] sm:$0xf]
    %v32 = vld [vmem:[%s1 + $0x14] sm:$0xf]
    %v33 = vld [vmem:[%s1 + $0x18] sm:$0xf]
    %v34 = vld [vmem:[%s1 + $0x1c] sm:$0xf]
    %v35 = vld [vmem:[%s2] sm:$0x1]
    %v37 = vlaneseq
    %v38 = vshrl.u32 %v37, 7
    %v39 = vsub.s32 0, %v38
    %v40 = vrot.slane %v35, %v39
    %v44 = vunpack.c.l.b16 %v25
    %v45 = vunpack.c.l.b16 %v26
    %v46 = vpack.c.b16 %v45, %v44
    %v55 = vunpack.c.l.b16 %v27
    %v56 = vunpack.c.l.b16 %v28
    %v57 = vunpack.c.l.b16 %v29
    %v58 = vunpack.c.l.b16 %v30
    %v59 = vunpack.c.l.b16 %v31
    %v60 = vunpack.c.l.b16 %v32
    %v61 = vunpack.c.l.b16 %v33
    %v62 = vunpack.c.l.b16 %v34
    %v63 = vpack.c.b16 %v56, %v55
    %v64 = vpack.c.b16 %v58, %v57
    %v65 = vpack.c.b16 %v60, %v59
    %v66 = vpack.c.b16 %v62, %v61
    %vm71 = vcmask 523264
    %v73 = vsel %vm71, %v46, 0
    %75 = vmatprep.subr.bf16.mxu0 0
    %76 = vmatpush1.bf16.msra.mxu0 0
    %77 = vmatprep.subr.bf16.mxu0 0
    %78 = vmatpush1.bf16.msra.mxu0 0
    %79 = vmatprep.subr.bf16.mxu0 0
    %80 = vmatpush1.bf16.msra.mxu0 0
    %81 = vmatprep.subr.bf16.mxu0 0
    %82 = vmatpush1.bf16.msra.mxu0 0
    %83 = vmatprep.subr.bf16.mxu0 0
    %84 = vmatpush1.bf16.msra.mxu0 %v66
    %85 = vmatprep.subr.bf16.mxu0 0
    %86 = vmatpush1.bf16.msra.mxu0 %v65
    %87 = vmatprep.subr.bf16.mxu0 0
    %88 = vmatpush1.bf16.msra.mxu0 %v64
    %89 = vmatprep.subr.bf16.mxu0 0
    %90 = vmatpush1.bf16.msra.mxu0 %v63
    %91 = vmatprep.subr.bf16.mxu0 0
    %92 = vmatpush2.bf16.msra.mxu0 0
    %93 = vmatprep.subr.bf16.mxu0 0
    %94 = vmatpush2.bf16.msra.mxu0 0
    %95 = vmatprep.subr.bf16.mxu0 0
    %96 = vmatpush2.bf16.msra.mxu0 0
    %97 = vmatprep.subr.bf16.mxu0 0
    %98 = vmatpush2.bf16.msra.mxu0 0
    %99 = vmatprep.subr.bf16.mxu0 0
    %100 = vmatpush2.bf16.msra.mxu0 0
    %101 = vmatprep.subr.bf16.mxu0 0
    %102 = vmatpush2.bf16.msra.mxu0 0
    %103 = vmatprep.subr.bf16.mxu0 0
    %104 = vmatpush2.bf16.msra.mxu0 0
    %105 = vmatprep.subr.bf16.mxu0 0
    %106 = vmatpush2.bf16.msra.mxu0 0
    %107 = vmatprep.mubr.bf16.mxu0 0
    %108 = vmatmul.mubr.bf16.gmra.mxu0 %v73
    %v109 = vpop.f32.mrf.mxu0
    %v110 = vadd.f32 %v40, %v109
    %v111 = vpop.f32.mrf.mxu0
    %v112 = vpop.f32.mrf.mxu0
    %v113 = vadd.f32 %v40, %v112
    %v114 = vpop.f32.mrf.mxu0
    %115 = vdwg.mxu0
    %v116 = vld [vmem:[%s3] sm:$0xf]
    %v117 = vld [vmem:[%s3 + $0x4] sm:$0xf]
    %v118 = vunpack.c.l.bf16 %v116
    %v119 = vunpack.c.l.bf16 %v117
    %v120 = vadd.f32 %v110, %v118
    %v121 = vadd.f32 %v113, %v119
    %vm122 = vcmask 261120
    %v123 = vsel %vm122, %v120, 0.0
    %124 = vadd.xlane.f32.xlu0 %v123
    %v125 = vpop.xlane.xlu0 %124
    %v126 = vsel %vm122, %v121, 0.0
    %127 = vadd.xlane.f32.xlu0 %v126
    %v128 = vpop.xlane.xlu0 %127
    %v129 = vrcp.pop 32.0
    %v130 = vmul.f32 %v125, %v129
    %v131 = vmul.f32 %v128, %v129
    %v132 = vmul.f32 %v120, %v120
    %v133 = vmul.f32 %v121, %v121
    %v134 = vsel %vm122, %v132, 0.0
    %135 = vadd.xlane.f32.xlu0 %v134
    %v136 = vpop.xlane.xlu0 %135
    %v137 = vsel %vm122, %v133, 0.0
    %138 = vadd.xlane.f32.xlu0 %v137
    %v139 = vpop.xlane.xlu0 %138
    %v140 = vmul.f32 %v136, %v129
    %v141 = vmul.f32 %v139, %v129
    %v142 = vmul.f32 %v130, %v130
    %v143 = vmul.f32 %v131, %v131
    %v144 = vsub.f32 %v140, %v142
    %v145 = vsub.f32 %v141, %v143
    %v146 = vmax.f32 %v144, 0.0
    %v147 = vmax.f32 %v145, 0.0
    %v148 = vsub.f32 %v120, %v130
    %v149 = vsub.f32 %v121, %v131
    %v150 = vadd.f32 %v146, 1e-12
    %v151 = vadd.f32 %v147, 1e-12
    %v152 = vrsqrt.pop %v150
    %v153 = vrsqrt.pop %v151
    %v154 = vmul.f32 %v148, %v152
    %v155 = vmul.f32 %v149, %v153
    %v156 = vld [vmem:[%s4] sm:$0x1]
    %v158 = vlaneseq
    %v159 = vshrl.u32 %v158, 7
    %v160 = vsub.s32 0, %v159
    %v161 = vrot.slane %v156, %v160
    %v163 = vmul.f32 %v154, %v161
    %v164 = vmul.f32 %v155, %v161
    %v165 = vld [vmem:[%s5] sm:$0x1]
    %v167 = vlaneseq
    %v168 = vshrl.u32 %v167, 7
    %v169 = vsub.s32 0, %v168
    %v170 = vrot.slane %v165, %v169
    %v172 = vadd.f32 %v163, %v170
    %v173 = vadd.f32 %v164, %v170
    %174 = vst.msk [vmem:[#allocation2] sm:$0xff] %vm122, %v172
    %175 = vst.msk [vmem:[#allocation2 + $0x8] sm:$0xff] %vm122, %v173
    // Predicated region
    $region26: #{tpu_custom_call.1} parent=1 // pred_check
      _
    $region27: #{tpu_custom_call.1} parent=1 // pred_check_branch
      %177 = sbr.rel (0) target = $region29
    $region28: #{tpu_custom_call.1} parent=1 // pred_region
      %s179 = ssub.s32 256, 256
      %180 = vsyncadd [#allocation3], %s179
      %s181 = sshll.u32 [#allocation2], 4
      %s182 = int_to_ptr.vmem [resolvable:$true] %s181
      %187 = dma.vmem_to_hbm [thread:$0]  %s182, 256, %s6, [#allocation3], 128, 128, 8
    $region29: #{tpu_custom_call.1} parent=1 // pred_fallthru
      _
    // Predicated region
    $region30: #{tpu_custom_call.1} parent=1 // pred_check
      _
    $region31: #{tpu_custom_call.1} parent=1 // pred_check_branch
      %189 = sbr.rel (0) target = $region33
    $region32: #{tpu_custom_call.1} parent=1 // pred_region
      %190 = dma.done [#allocation3], 256
    $region33: #{tpu_custom_call.1} parent=1 // pred_fallthru
      _
    %191 = vsyncpa [#allocation3], 1

</llo_original>
